<compile_context>
chip_gen: v7x
topology: tpu7x:2x2x1
jax: 0.10.0
libtpu: 0.0.40
codegen_flags: <defaults>
</compile_context>

<pallas_src>
import math

import jax
import jax.numpy as jnp
from jax.experimental import pallas as pl
from jax.experimental.pallas import tpu as pltpu

INPUT_DIM = 64     # `input_dim` global from the original script (chosen here)
NUM_CLASS = 3
LN_EPS = 1e-5      # PyTorch nn.LayerNorm default eps
H1, H2, H3 = 80, 40, 32


def _round_up(n, m):
    return ((n + m - 1) // m) * m


# ------------------------------- kernel --------------------------------------

def mlp_kernel(x_ref,
               w1_ref, b1_ref,
               w2_ref, b2_ref,
               w3_ref, b3_ref,
               wo_ref, bo_ref,
               o_ref):
    def lin_ln(h_bf16, w_ref, b_ref, n):
        # Extended matmul: lane `n` of the result holds the row-mean of lanes
        # [0, n) (mean column folded into the weight on the host), so no XLU
        # lane reduction is needed for the LayerNorm mean.
        he = jnp.dot(h_bf16, w_ref[...],
                     preferred_element_type=jnp.float32) + b_ref[...]
        h = he[:, :n]
        m = he[:, n:n + 1]
        d = h - m
        # Variance on the (idle) MXU instead of the XLU; two-pass form
        # E[(h-m)^2] avoids catastrophic cancellation.
        ones = jnp.ones((n, 1), jnp.float32)
        var = jnp.dot(d * d, ones,
                      preferred_element_type=jnp.float32) * (1.0 / n)
        return (d * jax.lax.rsqrt(var + LN_EPS)).astype(jnp.bfloat16)

    x = x_ref[...].astype(jnp.bfloat16)          # in-kernel cast (no host pass)

    h = lin_ln(x, w1_ref, b1_ref, H1)            # layer_1: Linear + LayerNorm
    h = lin_ln(h, w2_ref, b2_ref, H2)            # layer_2: Linear + LayerNorm
    # dropout(p=0.1) -> identity at inference time.
    h = lin_ln(h, w3_ref, b3_ref, H3)            # layer_3: Linear + LayerNorm
    # dropout(p=0.1) -> identity at inference time.

    out = jnp.dot(h, wo_ref[...],
                  preferred_element_type=jnp.float32) + bo_ref[...]
    o_ref[...] = out.astype(o_ref.dtype)


# ---------------------------- host-side prep ---------------------------------

def prepare_params(params):
    """One-time parameter preprocessing (hoisted out of the serving hot path)."""
    (w1, b1, g1, be1,
     w2, b2, g2, be2,
     w3, b3, g3, be3,
     wo, bo) = params

    # Fold each LayerNorm's affine into the *next* Linear:
    #   (n*g + be) @ W + b == n @ (diag(g) @ W) + (be @ W + b)
    w2f = g1[:, None] * w2
    b2f = be1 @ w2 + b2
    w3f = g2[:, None] * w3
    b3f = be2 @ w3 + b3
    wof = g3[:, None] * wo
    bof = be3 @ wo + bo

    def extend(w, b):
        # Append a column that computes the row-mean of the layer's output.
        we = jnp.concatenate([w, jnp.mean(w, axis=1, keepdims=True)], axis=1)
        be_ = jnp.concatenate([b, jnp.mean(b, keepdims=True)])
        return we.astype(jnp.bfloat16), be_.astype(jnp.float32).reshape(1, -1)

    w1e, b1e = extend(w1, b1)
    w2e, b2e = extend(w2f, b2f)
    w3e, b3e = extend(w3f, b3f)
    return (w1e, b1e, w2e, b2e, w3e, b3e,
            wof.astype(jnp.bfloat16), bof.astype(jnp.float32).reshape(1, -1))


def multiclass_classification_1(x, prepared, *, tile_b=2048):
    """Fused MLP forward. x: (batch, INPUT_DIM) f32 -> (batch, NUM_CLASS) f32."""
    (w1e, b1e, w2e, b2e, w3e, b3e, woe, boe) = prepared
    batch, in_dim = x.shape

    # >=2 grid steps whenever possible so ("parallel",) shards the batch across
    # both TensorCores on v7x; f32 sublane granularity is 8 rows.
    tb = min(tile_b, max(8, _round_up(pl.cdiv(batch, 2), 8)))
    grid = (pl.cdiv(batch, tb),)                 # ragged last block, no padding

    const = lambda i: (0, 0)                     # weights stay VMEM-resident
    in_specs = [
        pl.BlockSpec((tb, in_dim), lambda i: (i, 0)),   # x streamed over batch
        pl.BlockSpec(w1e.shape, const), pl.BlockSpec(b1e.shape, const),
        pl.BlockSpec(w2e.shape, const), pl.BlockSpec(b2e.shape, const),
        pl.BlockSpec(w3e.shape, const), pl.BlockSpec(b3e.shape, const),
        pl.BlockSpec(woe.shape, const), pl.BlockSpec(boe.shape, const),
    ]
    out_specs = pl.BlockSpec((tb, NUM_CLASS), lambda i: (i, 0))

    return pl.pallas_call(
        mlp_kernel,
        out_shape=jax.ShapeDtypeStruct((batch, NUM_CLASS), jnp.float32),
        grid=grid,
        in_specs=in_specs,
        out_specs=out_specs,
        compiler_params=pltpu.CompilerParams(
            dimension_semantics=("parallel",)),  # megacore sharding on v7x
    )(x, w1e, b1e, w2e, b2e, w3e, b3e, woe, boe)


# ------------------------------ test harness ---------------------------------

def _init_linear(key, fan_in, fan_out):
    """Deterministic init mimicking nn.Linear default (uniform +-1/sqrt(fan_in))."""
    kw, kb = jax.random.split(key)
    bound = 1.0 / math.sqrt(fan_in)
    # stored as (in, out) -> forward computes x @ W
    w = jax.random.uniform(kw, (fan_in, fan_out), jnp.float32, -bound, bound)
    b = jax.random.uniform(kb, (fan_out,), jnp.float32, -bound, bound)
    return w, b


def _init_ln(key, n):
    # PyTorch default init is gamma=1, beta=0; use non-trivial values here so
    # the affine-folding path is actually exercised by the correctness check.
    kg, kb = jax.random.split(key)
    g = jax.random.uniform(kg, (n,), jnp.float32, 0.75, 1.25)
    be = jax.random.uniform(kb, (n,), jnp.float32, -0.25, 0.25)
    return g, be


def make_params(key):
    k1, k2, k3, ko, kl1, kl2, kl3 = jax.random.split(key, 7)
    w1, b1 = _init_linear(k1, INPUT_DIM, H1)
    g1, be1 = _init_ln(kl1, H1)
    w2, b2 = _init_linear(k2, H1, H2)
    g2, be2 = _init_ln(kl2, H2)
    w3, b3 = _init_linear(k3, H2, H3)
    g3, be3 = _init_ln(kl3, H3)
    wo, bo = _init_linear(ko, H3, NUM_CLASS)
    return (w1, b1, g1, be1,
            w2, b2, g2, be2,
            w3, b3, g3, be3,
            wo, bo)


def reference_forward(x, params):
    """Original PyTorch semantics: f32 matmuls, two-pass LN with affine."""
    (w1, b1, g1, be1, w2, b2, g2, be2, w3, b3, g3, be3, wo, bo) = params

    def ln(h, g, be):
        m = jnp.mean(h, axis=-1, keepdims=True)
        v = jnp.mean((h - m) ** 2, axis=-1, keepdims=True)
        return (h - m) * jax.lax.rsqrt(v + LN_EPS) * g + be

    h = ln(x @ w1 + b1, g1, be1)
    h = ln(h @ w2 + b2, g2, be2)
    h = ln(h @ w3 + b3, g3, be3)
    return h @ wo + bo


if __name__ == "__main__":
    key = jax.random.PRNGKey(0)
    kx, kp = jax.random.split(key)

    batch = 8
    x = jax.random.normal(kx, (batch, INPUT_DIM), jnp.float32)
    params = make_params(kp)

    prepared = prepare_params(params)            # one-time, hoisted prep
    out = multiclass_classification_1(x, prepared)
    out = jax.block_until_ready(out)

    ref = reference_forward(x, params)
    assert out.shape == (batch, NUM_CLASS)
    # bf16 MXU inputs (f32 accumulation) -> tolerance is mixed-precision level,
    # still far below the ~0.2+ error any folding/LN bug would produce.
    assert jnp.allclose(out, ref, atol=5e-2, rtol=5e-2), (
        "mismatch vs JAX reference: max abs diff = "
        f"{float(jnp.max(jnp.abs(out - ref)))}")

    print("KERNEL_OK")
</pallas_src>

<mosaic_0001>
module attributes {stable_mosaic.version = 11 : i64} {
  func.func @mlp_kernel(%arg0: i32, %arg1: memref<8x64xf32, #tpu.memory_space<vmem>>, %arg2: memref<64x81xbf16, #tpu.memory_space<vmem>>, %arg3: memref<1x81xf32, #tpu.memory_space<vmem>>, %arg4: memref<80x41xbf16, #tpu.memory_space<vmem>>, %arg5: memref<1x41xf32, #tpu.memory_space<vmem>>, %arg6: memref<40x33xbf16, #tpu.memory_space<vmem>>, %arg7: memref<1x33xf32, #tpu.memory_space<vmem>>, %arg8: memref<32x3xbf16, #tpu.memory_space<vmem>>, %arg9: memref<1x3xf32, #tpu.memory_space<vmem>>, %arg10: memref<8x3xf32, #tpu.memory_space<vmem>>) attributes {dimension_semantics = [#tpu.dimension_semantics<parallel>], iteration_bounds = array<i64: 1>, scalar_prefetch = 0 : i64, scratch_operands = 0 : i64, tpu.core_type = #tpu.core_type<tc>, window_params = [{transform_indices = @transform_0, window_bounds = array<i64: 8, 64>}, {pipeline_mode = #tpu.pipeline_mode<synchronous>, transform_indices = @transform_1, window_bounds = array<i64: 64, 81>}, {pipeline_mode = #tpu.pipeline_mode<synchronous>, transform_indices = @transform_2, window_bounds = array<i64: 1, 81>}, {pipeline_mode = #tpu.pipeline_mode<synchronous>, transform_indices = @transform_3, window_bounds = array<i64: 80, 41>}, {pipeline_mode = #tpu.pipeline_mode<synchronous>, transform_indices = @transform_4, window_bounds = array<i64: 1, 41>}, {pipeline_mode = #tpu.pipeline_mode<synchronous>, transform_indices = @transform_5, window_bounds = array<i64: 40, 33>}, {pipeline_mode = #tpu.pipeline_mode<synchronous>, transform_indices = @transform_6, window_bounds = array<i64: 1, 33>}, {pipeline_mode = #tpu.pipeline_mode<synchronous>, transform_indices = @transform_7, window_bounds = array<i64: 32, 3>}, {pipeline_mode = #tpu.pipeline_mode<synchronous>, transform_indices = @transform_8, window_bounds = array<i64: 1, 3>}, {transform_indices = @transform_9, window_bounds = array<i64: 8, 3>}]} {
    %c0 = arith.constant 0 : index
    %c0_0 = arith.constant 0 : index
    %0 = vector.load %arg1[%c0, %c0_0] : memref<8x64xf32, #tpu.memory_space<vmem>>, vector<8x64xf32>
    %1 = arith.truncf %0 : vector<8x64xf32> to vector<8x64xbf16>
    %c0_1 = arith.constant 0 : index
    %c0_2 = arith.constant 0 : index
    %2 = vector.load %arg2[%c0_1, %c0_2] : memref<64x81xbf16, #tpu.memory_space<vmem>>, vector<64x81xbf16>
    %cst = arith.constant dense<0.000000e+00> : vector<8x81xf32>
    %3 = tpu.matmul %1, %2, %cst {dimension_numbers = #tpu.dot_dimension_numbers<[1], [0], [0], [1], [0, 0, 1, 1], [], []>} : vector<8x64xbf16>, vector<64x81xbf16>, vector<8x81xf32> -> vector<8x81xf32>
    %c0_3 = arith.constant 0 : index
    %c0_4 = arith.constant 0 : index
    %4 = vector.load %arg3[%c0_3, %c0_4] : memref<1x81xf32, #tpu.memory_space<vmem>>, vector<1x81xf32>
    %5 = vector.broadcast %4 : vector<1x81xf32> to vector<8x81xf32>
    %6 = arith.addf %3, %5 : vector<8x81xf32>
    %7 = vector.extract_strided_slice %6 {offsets = [0, 0], sizes = [8, 80], strides = [1, 1]} : vector<8x81xf32> to vector<8x80xf32>
    %8 = vector.extract_strided_slice %6 {offsets = [0, 80], sizes = [8, 1], strides = [1, 1]} : vector<8x81xf32> to vector<8x1xf32>
    %9 = vector.broadcast %8 : vector<8x1xf32> to vector<8x80xf32>
    %10 = arith.subf %7, %9 : vector<8x80xf32>
    %cst_5 = arith.constant 1.000000e+00 : f32
    %11 = vector.broadcast %cst_5 : f32 to vector<80x1xf32>
    %12 = arith.mulf %10, %10 : vector<8x80xf32>
    %cst_6 = arith.constant dense<0.000000e+00> : vector<8x1xf32>
    %13 = tpu.matmul %12, %11, %cst_6 {dimension_numbers = #tpu.dot_dimension_numbers<[1], [0], [0], [1], [0, 0, 1, 1], [], []>} : vector<8x80xf32>, vector<80x1xf32>, vector<8x1xf32> -> vector<8x1xf32>
    %cst_7 = arith.constant 1.250000e-02 : f32
    %14 = vector.broadcast %cst_7 : f32 to vector<8x1xf32>
    %15 = arith.mulf %13, %14 : vector<8x1xf32>
    %cst_8 = arith.constant 9.99999974E-6 : f32
    %16 = vector.broadcast %cst_8 : f32 to vector<8x1xf32>
    %17 = arith.addf %15, %16 : vector<8x1xf32>
    %18 = math.rsqrt %17 : vector<8x1xf32>
    %19 = vector.broadcast %18 : vector<8x1xf32> to vector<8x80xf32>
    %20 = arith.mulf %10, %19 : vector<8x80xf32>
    %21 = arith.truncf %20 : vector<8x80xf32> to vector<8x80xbf16>
    %c0_9 = arith.constant 0 : index
    %c0_10 = arith.constant 0 : index
    %22 = vector.load %arg4[%c0_9, %c0_10] : memref<80x41xbf16, #tpu.memory_space<vmem>>, vector<80x41xbf16>
    %cst_11 = arith.constant dense<0.000000e+00> : vector<8x41xf32>
    %23 = tpu.matmul %21, %22, %cst_11 {dimension_numbers = #tpu.dot_dimension_numbers<[1], [0], [0], [1], [0, 0, 1, 1], [], []>} : vector<8x80xbf16>, vector<80x41xbf16>, vector<8x41xf32> -> vector<8x41xf32>
    %c0_12 = arith.constant 0 : index
    %c0_13 = arith.constant 0 : index
    %24 = vector.load %arg5[%c0_12, %c0_13] : memref<1x41xf32, #tpu.memory_space<vmem>>, vector<1x41xf32>
    %25 = vector.broadcast %24 : vector<1x41xf32> to vector<8x41xf32>
    %26 = arith.addf %23, %25 : vector<8x41xf32>
    %27 = vector.extract_strided_slice %26 {offsets = [0, 0], sizes = [8, 40], strides = [1, 1]} : vector<8x41xf32> to vector<8x40xf32>
    %28 = vector.extract_strided_slice %26 {offsets = [0, 40], sizes = [8, 1], strides = [1, 1]} : vector<8x41xf32> to vector<8x1xf32>
    %29 = vector.broadcast %28 : vector<8x1xf32> to vector<8x40xf32>
    %30 = arith.subf %27, %29 : vector<8x40xf32>
    %cst_14 = arith.constant 1.000000e+00 : f32
    %31 = vector.broadcast %cst_14 : f32 to vector<40x1xf32>
    %32 = arith.mulf %30, %30 : vector<8x40xf32>
    %cst_15 = arith.constant dense<0.000000e+00> : vector<8x1xf32>
    %33 = tpu.matmul %32, %31, %cst_15 {dimension_numbers = #tpu.dot_dimension_numbers<[1], [0], [0], [1], [0, 0, 1, 1], [], []>} : vector<8x40xf32>, vector<40x1xf32>, vector<8x1xf32> -> vector<8x1xf32>
    %cst_16 = arith.constant 2.500000e-02 : f32
    %34 = vector.broadcast %cst_16 : f32 to vector<8x1xf32>
    %35 = arith.mulf %33, %34 : vector<8x1xf32>
    %cst_17 = arith.constant 9.99999974E-6 : f32
    %36 = vector.broadcast %cst_17 : f32 to vector<8x1xf32>
    %37 = arith.addf %35, %36 : vector<8x1xf32>
    %38 = math.rsqrt %37 : vector<8x1xf32>
    %39 = vector.broadcast %38 : vector<8x1xf32> to vector<8x40xf32>
    %40 = arith.mulf %30, %39 : vector<8x40xf32>
    %41 = arith.truncf %40 : vector<8x40xf32> to vector<8x40xbf16>
    %c0_18 = arith.constant 0 : index
    %c0_19 = arith.constant 0 : index
    %42 = vector.load %arg6[%c0_18, %c0_19] : memref<40x33xbf16, #tpu.memory_space<vmem>>, vector<40x33xbf16>
    %cst_20 = arith.constant dense<0.000000e+00> : vector<8x33xf32>
    %43 = tpu.matmul %41, %42, %cst_20 {dimension_numbers = #tpu.dot_dimension_numbers<[1], [0], [0], [1], [0, 0, 1, 1], [], []>} : vector<8x40xbf16>, vector<40x33xbf16>, vector<8x33xf32> -> vector<8x33xf32>
    %c0_21 = arith.constant 0 : index
    %c0_22 = arith.constant 0 : index
    %44 = vector.load %arg7[%c0_21, %c0_22] : memref<1x33xf32, #tpu.memory_space<vmem>>, vector<1x33xf32>
    %45 = vector.broadcast %44 : vector<1x33xf32> to vector<8x33xf32>
    %46 = arith.addf %43, %45 : vector<8x33xf32>
    %47 = vector.extract_strided_slice %46 {offsets = [0, 0], sizes = [8, 32], strides = [1, 1]} : vector<8x33xf32> to vector<8x32xf32>
    %48 = vector.extract_strided_slice %46 {offsets = [0, 32], sizes = [8, 1], strides = [1, 1]} : vector<8x33xf32> to vector<8x1xf32>
    %49 = vector.broadcast %48 : vector<8x1xf32> to vector<8x32xf32>
    %50 = arith.subf %47, %49 : vector<8x32xf32>
    %cst_23 = arith.constant 1.000000e+00 : f32
    %51 = vector.broadcast %cst_23 : f32 to vector<32x1xf32>
    %52 = arith.mulf %50, %50 : vector<8x32xf32>
    %cst_24 = arith.constant dense<0.000000e+00> : vector<8x1xf32>
    %53 = tpu.matmul %52, %51, %cst_24 {dimension_numbers = #tpu.dot_dimension_numbers<[1], [0], [0], [1], [0, 0, 1, 1], [], []>} : vector<8x32xf32>, vector<32x1xf32>, vector<8x1xf32> -> vector<8x1xf32>
    %cst_25 = arith.constant 3.125000e-02 : f32
    %54 = vector.broadcast %cst_25 : f32 to vector<8x1xf32>
    %55 = arith.mulf %53, %54 : vector<8x1xf32>
    %cst_26 = arith.constant 9.99999974E-6 : f32
    %56 = vector.broadcast %cst_26 : f32 to vector<8x1xf32>
    %57 = arith.addf %55, %56 : vector<8x1xf32>
    %58 = math.rsqrt %57 : vector<8x1xf32>
    %59 = vector.broadcast %58 : vector<8x1xf32> to vector<8x32xf32>
    %60 = arith.mulf %50, %59 : vector<8x32xf32>
    %61 = arith.truncf %60 : vector<8x32xf32> to vector<8x32xbf16>
    %c0_27 = arith.constant 0 : index
    %c0_28 = arith.constant 0 : index
    %62 = vector.load %arg8[%c0_27, %c0_28] : memref<32x3xbf16, #tpu.memory_space<vmem>>, vector<32x3xbf16>
    %cst_29 = arith.constant dense<0.000000e+00> : vector<8x3xf32>
    %63 = tpu.matmul %61, %62, %cst_29 {dimension_numbers = #tpu.dot_dimension_numbers<[1], [0], [0], [1], [0, 0, 1, 1], [], []>} : vector<8x32xbf16>, vector<32x3xbf16>, vector<8x3xf32> -> vector<8x3xf32>
    %c0_30 = arith.constant 0 : index
    %c0_31 = arith.constant 0 : index
    %64 = vector.load %arg9[%c0_30, %c0_31] : memref<1x3xf32, #tpu.memory_space<vmem>>, vector<1x3xf32>
    %65 = vector.broadcast %64 : vector<1x3xf32> to vector<8x3xf32>
    %66 = arith.addf %63, %65 : vector<8x3xf32>
    %c0_32 = arith.constant 0 : index
    %c0_33 = arith.constant 0 : index
    %67 = vector.load %arg10[%c0_32, %c0_33] : memref<8x3xf32, #tpu.memory_space<vmem>>, vector<8x3xf32>
    tpu.vector_store %arg10[%c0_32, %c0_33], %66 {strides = array<i32>} : memref<8x3xf32, #tpu.memory_space<vmem>>, vector<8x3xf32>,
    return
  }
  func.func @transform_0(%arg0: i32) -> (i32, i32) {
    %c0_i32 = arith.constant 0 : i32
    %c0_i32_0 = arith.constant 0 : i32
    return %arg0, %c0_i32 : i32, i32
  }
  func.func @transform_1(%arg0: i32) -> (i32, i32) {
    %c0_i32 = arith.constant 0 : i32
    %c0_i32_0 = arith.constant 0 : i32
    %c0_i32_1 = arith.constant 0 : i32
    return %c0_i32, %c0_i32_0 : i32, i32
  }
  func.func @transform_2(%arg0: i32) -> (i32, i32) {
    %c0_i32 = arith.constant 0 : i32
    %c0_i32_0 = arith.constant 0 : i32
    %c0_i32_1 = arith.constant 0 : i32
    return %c0_i32, %c0_i32_0 : i32, i32
  }
  func.func @transform_3(%arg0: i32) -> (i32, i32) {
    %c0_i32 = arith.constant 0 : i32
    %c0_i32_0 = arith.constant 0 : i32
    %c0_i32_1 = arith.constant 0 : i32
    return %c0_i32, %c0_i32_0 : i32, i32
  }
  func.func @transform_4(%arg0: i32) -> (i32, i32) {
    %c0_i32 = arith.constant 0 : i32
    %c0_i32_0 = arith.constant 0 : i32
    %c0_i32_1 = arith.constant 0 : i32
    return %c0_i32, %c0_i32_0 : i32, i32
  }
  func.func @transform_5(%arg0: i32) -> (i32, i32) {
    %c0_i32 = arith.constant 0 : i32
    %c0_i32_0 = arith.constant 0 : i32
    %c0_i32_1 = arith.constant 0 : i32
    return %c0_i32, %c0_i32_0 : i32, i32
  }
  func.func @transform_6(%arg0: i32) -> (i32, i32) {
    %c0_i32 = arith.constant 0 : i32
    %c0_i32_0 = arith.constant 0 : i32
    %c0_i32_1 = arith.constant 0 : i32
    return %c0_i32, %c0_i32_0 : i32, i32
  }
  func.func @transform_7(%arg0: i32) -> (i32, i32) {
    %c0_i32 = arith.constant 0 : i32
    %c0_i32_0 = arith.constant 0 : i32
    %c0_i32_1 = arith.constant 0 : i32
    return %c0_i32, %c0_i32_0 : i32, i32
  }
  func.func @transform_8(%arg0: i32) -> (i32, i32) {
    %c0_i32 = arith.constant 0 : i32
    %c0_i32_0 = arith.constant 0 : i32
    %c0_i32_1 = arith.constant 0 : i32
    return %c0_i32, %c0_i32_0 : i32, i32
  }
  func.func @transform_9(%arg0: i32) -> (i32, i32) {
    %c0_i32 = arith.constant 0 : i32
    %c0_i32_0 = arith.constant 0 : i32
    return %arg0, %c0_i32 : i32, i32
  }
}

</mosaic_0001>

<llo_original>
// kernel: tpu_custom_call.1
$region0: #{tpu_custom_call.1}
  #allocation0 [shape = 'u32[]', space=smem, size = 0x4, offset = 0x4, fixed_abs, tag = 'smem constant byte address 0x4 - core index']
  #allocation1 [shape = 'u32[144,128]{1,0:T(1,128)}', space=vmem, size = 0x12000, scoped, tag = 'internal scratch']
  %s0 = inlined_call_operand.vmem [shape: f32[8,64], index: 0, kind: input, shape index: {}]
  %s1 = inlined_call_operand.vmem [shape: bf16[64,81], index: 1, kind: input, shape index: {}]
  %s2 = inlined_call_operand.vmem [shape: f32[1,81], index: 2, kind: input, shape index: {}]
  %s3 = inlined_call_operand.vmem [shape: bf16[80,41], index: 3, kind: input, shape index: {}]
  %s4 = inlined_call_operand.vmem [shape: f32[1,41], index: 4, kind: input, shape index: {}]
  %s5 = inlined_call_operand.vmem [shape: bf16[40,33], index: 5, kind: input, shape index: {}]
  %s6 = inlined_call_operand.vmem [shape: f32[1,33], index: 6, kind: input, shape index: {}]
  %s7 = inlined_call_operand.vmem [shape: bf16[32,3], index: 7, kind: input, shape index: {}]
  %s8 = inlined_call_operand.vmem [shape: f32[1,3], index: 8, kind: input, shape index: {}]
  %s9 = inlined_call_operand.vmem [shape: f32[8,3], index: 9, kind: output, shape index: {}]
  %s10 = sld [smem:[#allocation0]]
  $region46: #{tpu_custom_call.1} parent=0
    _
  %s12 = ssub.s32 1, %s10
  %s13 = scalar_select 0, %s12, %s10
  // Predicated region
  $region2: #{tpu_custom_call.1} parent=0 // pred_check
    _
  $region3: #{tpu_custom_call.1} parent=0 // pred_check_branch
    %15 = sbr.rel (0) target = $region5
  $region4: #{tpu_custom_call.1} parent=0 // pred_region
    _
  $region5: #{tpu_custom_call.1} parent=0 // pred_fallthru
    _
  // Predicated region
  $region6: #{tpu_custom_call.1} parent=0 // pred_check
    _
  $region7: #{tpu_custom_call.1} parent=0 // pred_check_branch
    %17 = sbr.rel (0) target = $region9
  $region8: #{tpu_custom_call.1} parent=0 // pred_region
    _
  $region9: #{tpu_custom_call.1} parent=0 // pred_fallthru
    _
  // Predicated region
  $region10: #{tpu_custom_call.1} parent=0 // pred_check
    _
  $region11: #{tpu_custom_call.1} parent=0 // pred_check_branch
    %19 = sbr.rel (0) target = $region13
  $region12: #{tpu_custom_call.1} parent=0 // pred_region
    _
  $region13: #{tpu_custom_call.1} parent=0 // pred_fallthru
    _
  // Predicated region
  $region14: #{tpu_custom_call.1} parent=0 // pred_check
    _
  $region15: #{tpu_custom_call.1} parent=0 // pred_check_branch
    %21 = sbr.rel (0) target = $region17
  $region16: #{tpu_custom_call.1} parent=0 // pred_region
    _
  $region17: #{tpu_custom_call.1} parent=0 // pred_fallthru
    _
  // Predicated region
  $region18: #{tpu_custom_call.1} parent=0 // pred_check
    _
  $region19: #{tpu_custom_call.1} parent=0 // pred_check_branch
    %23 = sbr.rel (0) target = $region21
  $region20: #{tpu_custom_call.1} parent=0 // pred_region
    _
  $region21: #{tpu_custom_call.1} parent=0 // pred_fallthru
    _
  // Predicated region
  $region22: #{tpu_custom_call.1} parent=0 // pred_check
    _
  $region23: #{tpu_custom_call.1} parent=0 // pred_check_branch
    %25 = sbr.rel (0) target = $region25
  $region24: #{tpu_custom_call.1} parent=0 // pred_region
    _
  $region25: #{tpu_custom_call.1} parent=0 // pred_fallthru
    _
  // Predicated region
  $region26: #{tpu_custom_call.1} parent=0 // pred_check
    _
  $region27: #{tpu_custom_call.1} parent=0 // pred_check_branch
    %27 = sbr.rel (0) target = $region29
  $region28: #{tpu_custom_call.1} parent=0 // pred_region
    _
  $region29: #{tpu_custom_call.1} parent=0 // pred_fallthru
    _
  // Predicated region
  $region30: #{tpu_custom_call.1} parent=0 // pred_check
    _
  $region31: #{tpu_custom_call.1} parent=0 // pred_check_branch
    %29 = sbr.rel (0) target = $region33
  $region32: #{tpu_custom_call.1} parent=0 // pred_region
    _
  $region33: #{tpu_custom_call.1} parent=0 // pred_fallthru
    _
  // Predicated region
  $region34: #{tpu_custom_call.1} parent=0 // pred_check
    _
  $region35: #{tpu_custom_call.1} parent=0 // pred_check_branch
    %31 = sbr.rel (0) target = $region37
  $region36: #{tpu_custom_call.1} parent=0 // pred_region
    _
  $region37: #{tpu_custom_call.1} parent=0 // pred_fallthru
    _
  %v33 = vld [vmem:[%s0] sm:$0xff]
  %v34 = vpack.c.bf16 %v33, %v33
  %v35 = vld [vmem:[%s1] sm:$0xf]
  %v36 = vld [vmem:[%s1 + $0x4] sm:$0xf]
  %v37 = vld [vmem:[%s1 + $0x8] sm:$0xf]
  %v38 = vld [vmem:[%s1 + $0xc] sm:$0xf]
  %v39 = vld [vmem:[%s1 + $0x10] sm:$0xf]
  %v40 = vld [vmem:[%s1 + $0x14] sm:$0xf]
  %v41 = vld [vmem:[%s1 + $0x18] sm:$0xf]
  %v42 = vld [vmem:[%s1 + $0x1c] sm:$0xf]
  %v43 = vld [vmem:[%s2] sm:$0x1]
  %v45 = vlaneseq
  %v46 = vshrl.u32 %v45, 7
  %v47 = vsub.s32 0, %v46
  %v48 = vrot.slane %v43, %v47
  %v58 = vunpack.c.l.b16 %v35
  %v59 = vunpack.c.l.b16 %v36
  %v60 = vunpack.c.l.b16 %v37
  %v61 = vunpack.c.l.b16 %v38
  %v62 = vunpack.c.l.b16 %v39
  %v63 = vunpack.c.l.b16 %v40
  %v64 = vunpack.c.l.b16 %v41
  %v65 = vunpack.c.l.b16 %v42
  %v66 = vpack.c.b16 %v59, %v58
  %v67 = vpack.c.b16 %v61, %v60
  %v68 = vpack.c.b16 %v63, %v62
  %v69 = vpack.c.b16 %v65, %v64
  %vm74 = vcmask 523264
  %v76 = vsel %vm74, %v34, 0
  %78 = vmatprep.subr.bf16.mxu0 0
  %79 = vmatpush1.bf16.msra.mxu0 %v66
  %80 = vmatprep.subr.bf16.mxu0 0
  %81 = vmatpush1.bf16.msra.mxu0 %v67
  %82 = vmatprep.subr.bf16.mxu0 0
  %83 = vmatpush1.bf16.msra.mxu0 %v68
  %84 = vmatprep.subr.bf16.mxu0 0
  %85 = vmatpush1.bf16.msra.mxu0 %v69
  %86 = vmatprep.subr.bf16.mxu0 0
  %87 = vmatpush1.bf16.msra.mxu0 0
  %88 = vmatprep.subr.bf16.mxu0 0
  %89 = vmatpush1.bf16.msra.mxu0 0
  %90 = vmatprep.subr.bf16.mxu0 0
  %91 = vmatpush1.bf16.msra.mxu0 0
  %92 = vmatprep.subr.bf16.mxu0 0
  %93 = vmatpush1.bf16.msra.mxu0 0
  %94 = vmatprep.subr.bf16.mxu0 0
  %95 = vmatpush1.bf16.msra.mxu0 0
  %96 = vmatprep.subr.bf16.mxu0 0
  %97 = vmatpush1.bf16.msra.mxu0 0
  %98 = vmatprep.subr.bf16.mxu0 0
  %99 = vmatpush1.bf16.msra.mxu0 0
  %100 = vmatprep.subr.bf16.mxu0 0
  %101 = vmatpush1.bf16.msra.mxu0 0
  %102 = vmatprep.subr.bf16.mxu0 0
  %103 = vmatpush1.bf16.msra.mxu0 0
  %104 = vmatprep.subr.bf16.mxu0 0
  %105 = vmatpush1.bf16.msra.mxu0 0
  %106 = vmatprep.subr.bf16.mxu0 0
  %107 = vmatpush1.bf16.msra.mxu0 0
  %108 = vmatprep.subr.bf16.mxu0 0
  %109 = vmatpush1.bf16.msra.mxu0 0
  %110 = vmatprep.mubr.bf16.mxu0 0
  %111 = vmatmul.mubr.bf16.gmra.mrb[0].mxu0 %v76
  %v112 = vpop.f32.mrb[0].mxu0
  %v113 = vadd.f32 %v48, %v112
  %v114 = vpop.f32.mrb[0].mxu0
  %v115 = vpop.f32.mrb[0].mxu0
  %v116 = vpop.f32.mrb[0].mxu0
  %117 = vdwg.mxu0
  %119 = vset.pattern.permute.xlu0 80
  %120 = vperm.xlu0 %119, %v113
  %v121 = vpop.permute.xlu0 %120
  %v123 = vsub.f32 %v113, %v121
  %v124 = vmul.f32 %v123, %v123
  %vm125 = vcmask 654336
  %v127 = vsel %vm125, %v124, 0
  %129 = vmatprep.subr.mxu0 0.0
  %130 = vmatpush1.msra.mxu0 1.0
  %131 = vmatprep.subr.mxu0 0.0
  %132 = vmatpush1.msra.mxu0 1.0
  %133 = vmatprep.subr.mxu0 0.0
  %134 = vmatpush1.msra.mxu0 1.0
  %135 = vmatprep.subr.mxu0 0.0
  %136 = vmatpush1.msra.mxu0 1.0
  %137 = vmatprep.subr.mxu0 0.0
  %138 = vmatpush1.msra.mxu0 1.0
  %139 = vmatprep.subr.mxu0 0.0
  %140 = vmatpush1.msra.mxu0 1.0
  %141 = vmatprep.subr.mxu0 0.0
  %142 = vmatpush1.msra.mxu0 1.0
  %143 = vmatprep.subr.mxu0 0.0
  %144 = vmatpush1.msra.mxu0 1.0
  %145 = vmatprep.subr.mxu0 0.0
  %146 = vmatpush1.msra.mxu0 1.0
  %147 = vmatprep.subr.mxu0 0.0
  %148 = vmatpush1.msra.mxu0 1.0
  %149 = vmatprep.subr.mxu0 0.0
  %150 = vmatpush1.msra.mxu0 0.0
  %151 = vmatprep.subr.mxu0 0.0
  %152 = vmatpush1.msra.mxu0 0.0
  %153 = vmatprep.subr.mxu0 0.0
  %154 = vmatpush1.msra.mxu0 0.0
  %155 = vmatprep.subr.mxu0 0.0
  %156 = vmatpush1.msra.mxu0 0.0
  %157 = vmatprep.subr.mxu0 0.0
  %158 = vmatpush1.msra.mxu0 0.0
  %159 = vmatprep.subr.mxu0 0.0
  %160 = vmatpush1.msra.mxu0 0.0
  %161 = vmatprep.subr.mxu0 0.0
  %162 = vmatpush1.msra.mxu0 0.0
  %163 = vmatprep.subr.mxu0 0.0
  %164 = vmatpush1.msra.mxu0 0.0
  %165 = vmatprep.subr.mxu0 0.0
  %166 = vmatpush1.msra.mxu0 0.0
  %167 = vmatprep.subr.mxu0 0.0
  %168 = vmatpush1.msra.mxu0 0.0
  %169 = vmatprep.subr.mxu0 0.0
  %170 = vmatpush1.msra.mxu0 0.0
  %171 = vmatprep.subr.mxu0 0.0
  %172 = vmatpush1.msra.mxu0 0.0
  %173 = vmatprep.subr.mxu0 0.0
  %174 = vmatpush1.msra.mxu0 0.0
  %175 = vmatprep.subr.mxu0 0.0
  %176 = vmatpush1.msra.mxu0 0.0
  %177 = vmatprep.subr.mxu0 0.0
  %178 = vmatpush1.msra.mxu0 0.0
  %179 = vmatprep.subr.mxu0 0.0
  %180 = vmatpush1.msra.mxu0 0.0
  %181 = vmatprep.subr.mxu0 0.0
  %182 = vmatpush1.msra.mxu0 0.0
  %183 = vmatprep.subr.mxu0 0.0
  %184 = vmatpush1.msra.mxu0 0.0
  %185 = vmatprep.subr.mxu0 0.0
  %186 = vmatpush1.msra.mxu0 0.0
  %187 = vmatprep.subr.mxu0 0.0
  %188 = vmatpush1.msra.mxu0 0.0
  %189 = vmatprep.subr.mxu0 0.0
  %190 = vmatpush1.msra.mxu0 0.0
  %191 = vmatprep.subr.mxu0 0.0
  %192 = vmatpush1.msra.mxu0 0.0
  %193 = vmatprep.mubr.f32.mxu0 0.0
  %194 = vmatmul.mubr.f32.gmra.mrb[0].mxu0 %v127
  %v195 = vpop.f32.mrb[0].mxu0
  %v196 = vadd.f32 0.0, %v195
  %v197 = vpop.f32.mrb[0].mxu0
  %198 = vdwg.mxu0
  %v199 = vmul.f32 %v196, 0.0125
  %v200 = vadd.f32 %v199, 1e-05
  %v201 = vrsqrt.pop %v200
  %203 = vset.pattern.permute.xlu0 0
  %204 = vperm.xlu0 %203, %v201
  %v205 = vpop.permute.xlu0 %204
  %v207 = vmul.f32 %v123, %v205
  %v208 = vpack.c.bf16 %v207, %v207
  %v209 = vld [vmem:[%s3] sm:$0xf]
  %v210 = vld [vmem:[%s3 + $0x4] sm:$0xf]
  %v211 = vld [vmem:[%s3 + $0x8] sm:$0xf]
  %v212 = vld [vmem:[%s3 + $0xc] sm:$0xf]
  %v213 = vld [vmem:[%s3 + $0x10] sm:$0xf]
  %v214 = vld [vmem:[%s3 + $0x14] sm:$0xf]
  %v215 = vld [vmem:[%s3 + $0x18] sm:$0xf]
  %v216 = vld [vmem:[%s3 + $0x1c] sm:$0xf]
  %v217 = vld [vmem:[%s3 + $0x20] sm:$0xf]
  %v218 = vld [vmem:[%s3 + $0x24] sm:$0xf]
  %v219 = vld [vmem:[%s4] sm:$0x1]
  %v221 = vlaneseq
  %v222 = vshrl.u32 %v221, 7
  %v223 = vsub.s32 0, %v222
  %v224 = vrot.slane %v219, %v223
  %v236 = vunpack.c.l.b16 %v209
  %v237 = vunpack.c.l.b16 %v210
  %v238 = vunpack.c.l.b16 %v211
  %v239 = vunpack.c.l.b16 %v212
  %v240 = vunpack.c.l.b16 %v213
  %v241 = vunpack.c.l.b16 %v214
  %v242 = vunpack.c.l.b16 %v215
  %v243 = vunpack.c.l.b16 %v216
  %v244 = vunpack.c.l.b16 %v217
  %v245 = vunpack.c.l.b16 %v218
  %v246 = vpack.c.b16 %v237, %v236
  %v247 = vpack.c.b16 %v239, %v238
  %v248 = vpack.c.b16 %v241, %v240
  %v249 = vpack.c.b16 %v243, %v242
  %v250 = vpack.c.b16 %v245, %v244
  %v257 = vsel %vm125, %v208, 0
  %259 = vmatprep.subr.bf16.mxu0 0
  %260 = vmatpush1.bf16.msra.mxu0 %v246
  %261 = vmatprep.subr.bf16.mxu0 0
  %262 = vmatpush1.bf16.msra.mxu0 %v247
  %263 = vmatprep.subr.bf16.mxu0 0
  %264 = vmatpush1.bf16.msra.mxu0 %v248
  %265 = vmatprep.subr.bf16.mxu0 0
  %266 = vmatpush1.bf16.msra.mxu0 %v249
  %267 = vmatprep.subr.bf16.mxu0 0
  %268 = vmatpush1.bf16.msra.mxu0 %v250
  %269 = vmatprep.subr.bf16.mxu0 0
  %270 = vmatpush1.bf16.msra.mxu0 0
  %271 = vmatprep.subr.bf16.mxu0 0
  %272 = vmatpush1.bf16.msra.mxu0 0
  %273 = vmatprep.subr.bf16.mxu0 0
  %274 = vmatpush1.bf16.msra.mxu0 0
  %275 = vmatprep.subr.bf16.mxu0 0
  %276 = vmatpush1.bf16.msra.mxu0 0
  %277 = vmatprep.subr.bf16.mxu0 0
  %278 = vmatpush1.bf16.msra.mxu0 0
  %279 = vmatprep.subr.bf16.mxu0 0
  %280 = vmatpush1.bf16.msra.mxu0 0
  %281 = vmatprep.subr.bf16.mxu0 0
  %282 = vmatpush1.bf16.msra.mxu0 0
  %283 = vmatprep.subr.bf16.mxu0 0
  %284 = vmatpush1.bf16.msra.mxu0 0
  %285 = vmatprep.subr.bf16.mxu0 0
  %286 = vmatpush1.bf16.msra.mxu0 0
  %287 = vmatprep.subr.bf16.mxu0 0
  %288 = vmatpush1.bf16.msra.mxu0 0
  %289 = vmatprep.subr.bf16.mxu0 0
  %290 = vmatpush1.bf16.msra.mxu0 0
  %291 = vmatprep.mubr.bf16.mxu0 0
  %292 = vmatmul.mubr.bf16.gmra.mrb[0].mxu0 %v257
  %v293 = vpop.f32.mrb[0].mxu0
  %v294 = vadd.f32 %v224, %v293
  %v295 = vpop.f32.mrb[0].mxu0
  %v296 = vpop.f32.mrb[0].mxu0
  %v297 = vpop.f32.mrb[0].mxu0
  %298 = vdwg.mxu0
  %300 = vset.pattern.permute.xlu0 40
  %301 = vperm.xlu0 %300, %v294
  %v302 = vpop.permute.xlu0 %301
  %v304 = vsub.f32 %v294, %v302
  %v305 = vmul.f32 %v304, %v304
  %vm306 = vcmask 326656
  %v308 = vsel %vm306, %v305, 0
  %310 = vmatprep.subr.mxu0 0.0
  %311 = vmatpush1.msra.mxu0 1.0
  %312 = vmatprep.subr.mxu0 0.0
  %313 = vmatpush1.msra.mxu0 1.0
  %314 = vmatprep.subr.mxu0 0.0
  %315 = vmatpush1.msra.mxu0 1.0
  %316 = vmatprep.subr.mxu0 0.0
  %317 = vmatpush1.msra.mxu0 1.0
  %318 = vmatprep.subr.mxu0 0.0
  %319 = vmatpush1.msra.mxu0 1.0
  %320 = vmatprep.subr.mxu0 0.0
  %321 = vmatpush1.msra.mxu0 0.0
  %322 = vmatprep.subr.mxu0 0.0
  %323 = vmatpush1.msra.mxu0 0.0
  %324 = vmatprep.subr.mxu0 0.0
  %325 = vmatpush1.msra.mxu0 0.0
  %326 = vmatprep.subr.mxu0 0.0
  %327 = vmatpush1.msra.mxu0 0.0
  %328 = vmatprep.subr.mxu0 0.0
  %329 = vmatpush1.msra.mxu0 0.0
  %330 = vmatprep.subr.mxu0 0.0
  %331 = vmatpush1.msra.mxu0 0.0
  %332 = vmatprep.subr.mxu0 0.0
  %333 = vmatpush1.msra.mxu0 0.0
  %334 = vmatprep.subr.mxu0 0.0
  %335 = vmatpush1.msra.mxu0 0.0
  %336 = vmatprep.subr.mxu0 0.0
  %337 = vmatpush1.msra.mxu0 0.0
  %338 = vmatprep.subr.mxu0 0.0
  %339 = vmatpush1.msra.mxu0 0.0
  %340 = vmatprep.subr.mxu0 0.0
  %341 = vmatpush1.msra.mxu0 0.0
  %342 = vmatprep.subr.mxu0 0.0
  %343 = vmatpush1.msra.mxu0 0.0
  %344 = vmatprep.subr.mxu0 0.0
  %345 = vmatpush1.msra.mxu0 0.0
  %346 = vmatprep.subr.mxu0 0.0
  %347 = vmatpush1.msra.mxu0 0.0
  %348 = vmatprep.subr.mxu0 0.0
  %349 = vmatpush1.msra.mxu0 0.0
  %350 = vmatprep.subr.mxu0 0.0
  %351 = vmatpush1.msra.mxu0 0.0
  %352 = vmatprep.subr.mxu0 0.0
  %353 = vmatpush1.msra.mxu0 0.0
  %354 = vmatprep.subr.mxu0 0.0
  %355 = vmatpush1.msra.mxu0 0.0
  %356 = vmatprep.subr.mxu0 0.0
  %357 = vmatpush1.msra.mxu0 0.0
  %358 = vmatprep.subr.mxu0 0.0
  %359 = vmatpush1.msra.mxu0 0.0
  %360 = vmatprep.subr.mxu0 0.0
  %361 = vmatpush1.msra.mxu0 0.0
  %362 = vmatprep.subr.mxu0 0.0
  %363 = vmatpush1.msra.mxu0 0.0
  %364 = vmatprep.subr.mxu0 0.0
  %365 = vmatpush1.msra.mxu0 0.0
  %366 = vmatprep.subr.mxu0 0.0
  %367 = vmatpush1.msra.mxu0 0.0
  %368 = vmatprep.subr.mxu0 0.0
  %369 = vmatpush1.msra.mxu0 0.0
  %370 = vmatprep.subr.mxu0 0.0
  %371 = vmatpush1.msra.mxu0 0.0
  %372 = vmatprep.subr.mxu0 0.0
  %373 = vmatpush1.msra.mxu0 0.0
  %374 = vmatprep.mubr.f32.mxu0 0.0
  %375 = vmatmul.mubr.f32.gmra.mrb[0].mxu0 %v308
  %v376 = vpop.f32.mrb[0].mxu0
  %v377 = vadd.f32 0.0, %v376
  %v378 = vpop.f32.mrb[0].mxu0
  %379 = vdwg.mxu0
  %v380 = vmul.f32 %v377, 0.025
  %v381 = vadd.f32 %v380, 1e-05
  %v382 = vrsqrt.pop %v381
  %384 = vset.pattern.permute.xlu0 0
  %385 = vperm.xlu0 %384, %v382
  %v386 = vpop.permute.xlu0 %385
  %v388 = vmul.f32 %v304, %v386
  %v389 = vpack.c.bf16 %v388, %v388
  %v390 = vld [vmem:[%s5] sm:$0xf]
  %v391 = vld [vmem:[%s5 + $0x4] sm:$0xf]
  %v392 = vld [vmem:[%s5 + $0x8] sm:$0xf]
  %v393 = vld [vmem:[%s5 + $0xc] sm:$0xf]
  %v394 = vld [vmem:[%s5 + $0x10] sm:$0xf]
  %v395 = vld [vmem:[%s6] sm:$0x1]
  %v397 = vlaneseq
  %v398 = vshrl.u32 %v397, 7
  %v399 = vsub.s32 0, %v398
  %v400 = vrot.slane %v395, %v399
  %v407 = vunpack.c.l.b16 %v390
  %v408 = vunpack.c.l.b16 %v391
  %v409 = vunpack.c.l.b16 %v392
  %v410 = vunpack.c.l.b16 %v393
  %v411 = vunpack.c.l.b16 %v394
  %v412 = vpack.c.b16 %v408, %v407
  %v413 = vpack.c.b16 %v410, %v409
  %v414 = vpack.c.b16 %v411, %v411
  %v418 = vsel %vm306, %v389, 0
  %vm420 = vcmask 1043456
  %v422 = vsel %vm420, %v414, 0
  %424 = vmatprep.subr.bf16.mxu0 0
  %425 = vmatpush1.bf16.msra.mxu0 %v412
  %426 = vmatprep.subr.bf16.mxu0 0
  %427 = vmatpush1.bf16.msra.mxu0 %v413
  %428 = vmatprep.subr.bf16.mxu0 0
  %429 = vmatpush1.bf16.msra.mxu0 %v422
  %430 = vmatprep.subr.bf16.mxu0 0
  %431 = vmatpush1.bf16.msra.mxu0 0
  %432 = vmatprep.subr.bf16.mxu0 0
  %433 = vmatpush1.bf16.msra.mxu0 0
  %434 = vmatprep.subr.bf16.mxu0 0
  %435 = vmatpush1.bf16.msra.mxu0 0
  %436 = vmatprep.subr.bf16.mxu0 0
  %437 = vmatpush1.bf16.msra.mxu0 0
  %438 = vmatprep.subr.bf16.mxu0 0
  %439 = vmatpush1.bf16.msra.mxu0 0
  %440 = vmatprep.subr.bf16.mxu0 0
  %441 = vmatpush1.bf16.msra.mxu0 0
  %442 = vmatprep.subr.bf16.mxu0 0
  %443 = vmatpush1.bf16.msra.mxu0 0
  %444 = vmatprep.subr.bf16.mxu0 0
  %445 = vmatpush1.bf16.msra.mxu0 0
  %446 = vmatprep.subr.bf16.mxu0 0
  %447 = vmatpush1.bf16.msra.mxu0 0
  %448 = vmatprep.subr.bf16.mxu0 0
  %449 = vmatpush1.bf16.msra.mxu0 0
  %450 = vmatprep.subr.bf16.mxu0 0
  %451 = vmatpush1.bf16.msra.mxu0 0
  %452 = vmatprep.subr.bf16.mxu0 0
  %453 = vmatpush1.bf16.msra.mxu0 0
  %454 = vmatprep.subr.bf16.mxu0 0
  %455 = vmatpush1.bf16.msra.mxu0 0
  %456 = vmatprep.mubr.bf16.mxu0 0
  %457 = vmatmul.mubr.bf16.gmra.mrb[0].mxu0 %v418
  %v458 = vpop.f32.mrb[0].mxu0
  %v459 = vadd.f32 %v400, %v458
  %v460 = vpop.f32.mrb[0].mxu0
  %v461 = vpop.f32.mrb[0].mxu0
  %v462 = vpop.f32.mrb[0].mxu0
  %463 = vdwg.mxu0
  %465 = vset.pattern.permute.xlu0 32
  %466 = vperm.xlu0 %465, %v459
  %v467 = vpop.permute.xlu0 %466
  %v469 = vsub.f32 %v459, %v467
  %v470 = vmul.f32 %v469, %v469
  %vm471 = vcmask 261120
  %v473 = vsel %vm471, %v470, 0
  %475 = vmatprep.subr.mxu0 0.0
  %476 = vmatpush1.msra.mxu0 1.0
  %477 = vmatprep.subr.mxu0 0.0
  %478 = vmatpush1.msra.mxu0 1.0
  %479 = vmatprep.subr.mxu0 0.0
  %480 = vmatpush1.msra.mxu0 1.0
  %481 = vmatprep.subr.mxu0 0.0
  %482 = vmatpush1.msra.mxu0 1.0
  %483 = vmatprep.subr.mxu0 0.0
  %484 = vmatpush1.msra.mxu0 0.0
  %485 = vmatprep.subr.mxu0 0.0
  %486 = vmatpush1.msra.mxu0 0.0
  %487 = vmatprep.subr.mxu0 0.0
  %488 = vmatpush1.msra.mxu0 0.0
  %489 = vmatprep.subr.mxu0 0.0
  %490 = vmatpush1.msra.mxu0 0.0
  %491 = vmatprep.subr.mxu0 0.0
  %492 = vmatpush1.msra.mxu0 0.0
  %493 = vmatprep.subr.mxu0 0.0
  %494 = vmatpush1.msra.mxu0 0.0
  %495 = vmatprep.subr.mxu0 0.0
  %496 = vmatpush1.msra.mxu0 0.0
  %497 = vmatprep.subr.mxu0 0.0
  %498 = vmatpush1.msra.mxu0 0.0
  %499 = vmatprep.subr.mxu0 0.0
  %500 = vmatpush1.msra.mxu0 0.0
  %501 = vmatprep.subr.mxu0 0.0
  %502 = vmatpush1.msra.mxu0 0.0
  %503 = vmatprep.subr.mxu0 0.0
  %504 = vmatpush1.msra.mxu0 0.0
  %505 = vmatprep.subr.mxu0 0.0
  %506 = vmatpush1.msra.mxu0 0.0
  %507 = vmatprep.subr.mxu0 0.0
  %508 = vmatpush1.msra.mxu0 0.0
  %509 = vmatprep.subr.mxu0 0.0
  %510 = vmatpush1.msra.mxu0 0.0
  %511 = vmatprep.subr.mxu0 0.0
  %512 = vmatpush1.msra.mxu0 0.0
  %513 = vmatprep.subr.mxu0 0.0
  %514 = vmatpush1.msra.mxu0 0.0
  %515 = vmatprep.subr.mxu0 0.0
  %516 = vmatpush1.msra.mxu0 0.0
  %517 = vmatprep.subr.mxu0 0.0
  %518 = vmatpush1.msra.mxu0 0.0
  %519 = vmatprep.subr.mxu0 0.0
  %520 = vmatpush1.msra.mxu0 0.0
  %521 = vmatprep.subr.mxu0 0.0
  %522 = vmatpush1.msra.mxu0 0.0
  %523 = vmatprep.subr.mxu0 0.0
  %524 = vmatpush1.msra.mxu0 0.0
  %525 = vmatprep.subr.mxu0 0.0
  %526 = vmatpush1.msra.mxu0 0.0
  %527 = vmatprep.subr.mxu0 0.0
  %528 = vmatpush1.msra.mxu0 0.0
  %529 = vmatprep.subr.mxu0 0.0
  %530 = vmatpush1.msra.mxu0 0.0
  %531 = vmatprep.subr.mxu0 0.0
  %532 = vmatpush1.msra.mxu0 0.0
  %533 = vmatprep.subr.mxu0 0.0
  %534 = vmatpush1.msra.mxu0 0.0
  %535 = vmatprep.subr.mxu0 0.0
  %536 = vmatpush1.msra.mxu0 0.0
  %537 = vmatprep.subr.mxu0 0.0
  %538 = vmatpush1.msra.mxu0 0.0
  %539 = vmatprep.mubr.f32.mxu0 0.0
  %540 = vmatmul.mubr.f32.gmra.mrb[0].mxu0 %v473
  %v541 = vpop.f32.mrb[0].mxu0
  %v542 = vadd.f32 0.0, %v541
  %v543 = vpop.f32.mrb[0].mxu0
  %544 = vdwg.mxu0
  %v545 = vmul.f32 %v542, 0.03125
  %v546 = vadd.f32 %v545, 1e-05
  %v547 = vrsqrt.pop %v546
  %549 = vset.pattern.permute.xlu0 0
  %550 = vperm.xlu0 %549, %v547
  %v551 = vpop.permute.xlu0 %550
  %v553 = vmul.f32 %v469, %v551
  %v554 = vpack.c.bf16 %v553, %v553
  %v555 = vld [vmem:[%s7] sm:$0xf]
  %v556 = vld [vmem:[%s7 + $0x4] sm:$0xf]
  %v557 = vld [vmem:[%s7 + $0x8] sm:$0xf]
  %v558 = vld [vmem:[%s7 + $0xc] sm:$0xf]
  %v559 = vld [vmem:[%s8] sm:$0x1]
  %v561 = vlaneseq
  %v562 = vshrl.u32 %v561, 7
  %v563 = vsub.s32 0, %v562
  %v564 = vrot.slane %v559, %v563
  %v570 = vunpack.c.l.b16 %v555
  %v571 = vunpack.c.l.b16 %v556
  %v572 = vunpack.c.l.b16 %v557
  %v573 = vunpack.c.l.b16 %v558
  %v574 = vpack.c.b16 %v571, %v570
  %v575 = vpack.c.b16 %v573, %v572
  %v579 = vsel %vm471, %v554, 0
  %581 = vmatprep.subr.bf16.mxu0 0
  %582 = vmatpush1.bf16.msra.mxu0 %v574
  %583 = vmatprep.subr.bf16.mxu0 0
  %584 = vmatpush1.bf16.msra.mxu0 %v575
  %585 = vmatprep.subr.bf16.mxu0 0
  %586 = vmatpush1.bf16.msra.mxu0 0
  %587 = vmatprep.subr.bf16.mxu0 0
  %588 = vmatpush1.bf16.msra.mxu0 0
  %589 = vmatprep.subr.bf16.mxu0 0
  %590 = vmatpush1.bf16.msra.mxu0 0
  %591 = vmatprep.subr.bf16.mxu0 0
  %592 = vmatpush1.bf16.msra.mxu0 0
  %593 = vmatprep.subr.bf16.mxu0 0
  %594 = vmatpush1.bf16.msra.mxu0 0
  %595 = vmatprep.subr.bf16.mxu0 0
  %596 = vmatpush1.bf16.msra.mxu0 0
  %597 = vmatprep.subr.bf16.mxu0 0
  %598 = vmatpush1.bf16.msra.mxu0 0
  %599 = vmatprep.subr.bf16.mxu0 0
  %600 = vmatpush1.bf16.msra.mxu0 0
  %601 = vmatprep.subr.bf16.mxu0 0
  %602 = vmatpush1.bf16.msra.mxu0 0
  %603 = vmatprep.subr.bf16.mxu0 0
  %604 = vmatpush1.bf16.msra.mxu0 0
  %605 = vmatprep.subr.bf16.mxu0 0
  %606 = vmatpush1.bf16.msra.mxu0 0
  %607 = vmatprep.subr.bf16.mxu0 0
  %608 = vmatpush1.bf16.msra.mxu0 0
  %609 = vmatprep.subr.bf16.mxu0 0
  %610 = vmatpush1.bf16.msra.mxu0 0
  %611 = vmatprep.subr.bf16.mxu0 0
  %612 = vmatpush1.bf16.msra.mxu0 0
  %613 = vmatprep.mubr.bf16.mxu0 0
  %614 = vmatmul.mubr.bf16.gmra.mrb[0].mxu0 %v579
  %v615 = vpop.f32.mrb[0].mxu0
  %v616 = vadd.f32 %v564, %v615
  %v617 = vpop.f32.mrb[0].mxu0
  %v618 = vpop.f32.mrb[0].mxu0
  %v619 = vpop.f32.mrb[0].mxu0
  %620 = vdwg.mxu0
  %vm621 = vcmask 23552
  %622 = vst.msk [vmem:[%s9] sm:$0xff] %vm621, %v616
  // Predicated region
  $region38: #{tpu_custom_call.1} parent=0 // pred_check
    _
  $region39: #{tpu_custom_call.1} parent=0 // pred_check_branch
    %624 = sbr.rel (0) target = $region41
  $region40: #{tpu_custom_call.1} parent=0 // pred_region
    _
  $region41: #{tpu_custom_call.1} parent=0 // pred_fallthru
    _
  // Predicated region
  $region42: #{tpu_custom_call.1} parent=0 // pred_check
    _
  $region43: #{tpu_custom_call.1} parent=0 // pred_check_branch
    %626 = sbr.rel (0) target = $region45
  $region44: #{tpu_custom_call.1} parent=0 // pred_region
    _
  $region45: #{tpu_custom_call.1} parent=0 // pred_fallthru
    _

</llo_original>
